<compile_context>
chip_gen: v5e
topology: v5e:2x2
jax: 0.10.0
libtpu: 0.0.40
codegen_flags: <defaults>
</compile_context>

<pallas_src>
import functools

import jax
import jax.numpy as jnp
from jax.experimental import pallas as pl
from jax.experimental.pallas import tpu as pltpu


QT_COLS = 7                              # 4 (quaternion) + 3 (translation)
QT_PAD = 128                             # lane-dense padded width for the q/t output
TARGET_BLOCK_BYTES = 8 * 1024 * 1024     # ~8 MiB x-block (perf review: 8-12 MiB)


def _cdiv(a, b):
    return (a + b - 1) // b


def _round_up(v, m):
    return _cdiv(v, m) * m


def _regressor_kernel(x_ref, wfc_ref, bfc_ref, wqt_ref, bqt_ref,
                      h_ref, qt_ref, acc_ref, *, inv_hw):
    """Grid = (B tiles [parallel], HW tiles [arbitrary reduction])."""
    j = pl.program_id(1)

    @pl.when(j == 0)
    def _init():
        acc_ref[...] = jnp.zeros_like(acc_ref)

    # x block is (TB, C, THW): spatial on lanes -> XLU cross-lane reduce, with
    # f32 accumulation requested on the reduce itself (no full-block f32 copy).
    # The kernel is HBM-bandwidth-bound, so the XLU slot is effectively free.
    acc_ref[...] += jnp.sum(x_ref[...], axis=-1, dtype=jnp.float32)

    @pl.when(j == pl.num_programs(1) - 1)
    def _finalize():
        pooled = acc_ref[...] * inv_hw                               # (TB, C) f32
        h = jnp.dot(pooled, wfc_ref[...].astype(jnp.float32),
                    preferred_element_type=jnp.float32)
        h = h + bfc_ref[...].astype(jnp.float32)                     # (TB, 1024)
        h_ref[...] = h.astype(h_ref.dtype)
        # Precomposed head: qt = pooled @ (Wfc^T [Wq^T|Wt^T]) + b_fc [Wq^T|Wt^T]
        qt = jnp.dot(pooled, wqt_ref[...],
                     preferred_element_type=jnp.float32) + bqt_ref[...]
        qt_ref[...] = qt.astype(qt_ref.dtype)


def prepare_regressor_params(w_fc, b_fc, w_q, w_t):
    """One-time parameter prep (hoisted out of the per-call path).

    PyTorch layouts: w_fc (1024, C), b_fc (1024,), w_q (4, 1024), w_t (3, 1024).
    Returns:
      wfc_t (C, 1024), bfc (1, 1024),
      wqt_c (C, 128)  = Wfc^T @ [Wq^T | Wt^T], zero-padded to 128 lanes (f32),
      bqt_c (1, 128)  = b_fc @ [Wq^T | Wt^T], zero-padded to 128 lanes (f32).
    """
    w_fc = jnp.asarray(w_fc)
    b_fc = jnp.asarray(b_fc)
    hidden = w_fc.shape[0]
    wfc_t = w_fc.T                                                   # (C, 1024)
    bfc = b_fc.reshape(1, hidden)                                    # (1, 1024)

    wqt_t = jnp.concatenate([jnp.asarray(w_q).T, jnp.asarray(w_t).T],
                            axis=1).astype(jnp.float32)              # (1024, 7)
    # Precompose the tiny q/t head into pooled space (kept in f32; ~C*0.5 KiB).
    wqt_c = jnp.dot(wfc_t.astype(jnp.float32), wqt_t)                # (C, 7)
    bqt_c = jnp.dot(bfc.astype(jnp.float32), wqt_t)                  # (1, 7)
    wqt_c = jnp.pad(wqt_c, ((0, 0), (0, QT_PAD - QT_COLS)))          # lane-dense
    bqt_c = jnp.pad(bqt_c, ((0, 0), (0, QT_PAD - QT_COLS)))
    return wfc_t, bfc, wqt_c, bqt_c


def _choose_tiles(B, C, HW, itemsize):
    """Pick (TB, B_pad, THW, HW_pad) for the natural (B, C, HW) layout."""
    # Batch tile: full extent for small B (no padding); otherwise >=2 blocks so
    # the "parallel" axis can shard across v7x's 2 TensorCores, <= ~64 rows,
    # rounded to the sublane granule (8) while minimizing dead padded rows.
    if B >= 16:
        nb = max(2, _cdiv(B, 64))
        TB = _round_up(_cdiv(B, nb), 8)
    else:
        TB = B

    def pick_thw(tb):
        row_bytes = max(1, tb * C * itemsize)
        if HW * row_bytes <= TARGET_BLOCK_BYTES or HW <= 128:
            return HW                       # full extent -> no HW padding
        return max(128, (TARGET_BLOCK_BYTES // row_bytes) // 128 * 128)

    THW = pick_thw(TB)
    # Small-HW / huge-C corner: shrink the batch tile rather than zero-padding
    # a short spatial axis up to 128 lanes.
    while TB >= 16 and TB * C * THW * itemsize > (3 * TARGET_BLOCK_BYTES) // 2:
        TB = _round_up(TB // 2, 8)
        THW = pick_thw(TB)

    return TB, _round_up(B, TB), THW, _round_up(HW, THW)


def regressor_forward(x_nchw, wfc_t, bfc, wqt_c, bqt_c):
    B, C, H, W = x_nchw.shape
    HW = H * W
    hidden = wfc_t.shape[1]
    dtype = x_nchw.dtype
    itemsize = jnp.dtype(dtype).itemsize

    # Natural contiguous layout: (B, C, HW).  This reshape is free for NCHW
    # input (no transpose, no extra HBM pass).  Spatial -> lanes, C -> sublanes.
    # TODO(synk): if the upstream conv emits NHWC, add a variant that reduces
    # over sublanes instead of transposing here.
    x_flat = x_nchw.reshape(B, C, HW)

    TB, B_pad, THW, HW_pad = _choose_tiles(B, C, HW, itemsize)
    if (B_pad, HW_pad) != (B, HW):
        # Zero padding keeps the spatial sums exact (inv_hw uses the true HW).
        # TODO(synk): mask ragged HW tails in-kernel to avoid this pad copy.
        x_flat = jnp.pad(x_flat, ((0, B_pad - B), (0, 0), (0, HW_pad - HW)))

    grid = (B_pad // TB, HW_pad // THW)

    # Constant-index weight operands: single-buffer them only when big enough
    # to matter (e.g. C=2048 -> 8 MiB fc weight), freeing VMEM for larger x
    # blocks.  Tiny weights keep the default pipelining.
    w_bytes = sum(int(a.size) * a.dtype.itemsize
                  for a in (wfc_t, bfc, wqt_c, bqt_c))
    single_buffer_w = w_bytes >= (4 << 20)
    w_kwargs = {"pipeline_mode": pl.Buffered(1)} if single_buffer_w else {}
    w_bufs = 1 if single_buffer_w else 2

    x_block_bytes = TB * C * THW * itemsize
    out_block_bytes = TB * (hidden + QT_PAD) * itemsize
    acc_bytes = 4 * TB * _round_up(C, 128)
    vmem_est = (2 * x_block_bytes + w_bufs * w_bytes
                + 2 * out_block_bytes + acc_bytes)
    # Cap below the smallest physical VMEM (v7x: 64 MiB/TC) for headroom.
    vmem_limit = int(min(max(2 * vmem_est, 16 << 20), 48 << 20))

    flops = B * HW * C + 2 * B * C * hidden + 2 * B * C * QT_PAD
    bytes_accessed = int(itemsize * (B * HW * C + B * (hidden + QT_PAD))
                         + w_bytes)

    kernel = functools.partial(_regressor_kernel, inv_hw=float(1.0 / HW))

    h_pad, qt_out = pl.pallas_call(
        kernel,
        out_shape=(
            jax.ShapeDtypeStruct((B_pad, hidden), dtype),
            jax.ShapeDtypeStruct((B_pad, QT_PAD), dtype),
        ),
        grid=grid,
        in_specs=[
            pl.BlockSpec((TB, C, THW), lambda i, j: (i, 0, j)),
            pl.BlockSpec((C, hidden), lambda i, j: (0, 0), **w_kwargs),
            pl.BlockSpec((1, hidden), lambda i, j: (0, 0), **w_kwargs),
            pl.BlockSpec((C, QT_PAD), lambda i, j: (0, 0), **w_kwargs),
            pl.BlockSpec((1, QT_PAD), lambda i, j: (0, 0), **w_kwargs),
        ],
        out_specs=(
            pl.BlockSpec((TB, hidden), lambda i, j: (i, 0)),
            pl.BlockSpec((TB, QT_PAD), lambda i, j: (i, 0)),
        ),
        scratch_shapes=[pltpu.VMEM((TB, C), jnp.float32)],
        compiler_params=pltpu.CompilerParams(
            dimension_semantics=("parallel", "arbitrary"),
            vmem_limit_bytes=vmem_limit,
        ),
        cost_estimate=pl.CostEstimate(flops=flops, transcendentals=0,
                                      bytes_accessed=bytes_accessed),
    )(x_flat, wfc_t, bfc, wqt_c, bqt_c)

    h = h_pad[:B]
    q = qt_out[:B, :4]
    t = qt_out[:B, 4:QT_COLS]
    return h, q, t


if __name__ == "__main__":
    key = jax.random.PRNGKey(0)
    B, C, H, W = 2, 4, 16, 16                       # inplanes = C = 4
    HIDDEN = 1024

    k_x, k_fc_w, k_fc_b, k_q, k_t = jax.random.split(key, 5)
    x = jax.random.normal(k_x, (B, C, H, W), dtype=jnp.float32)

    # PyTorch Linear weight layout: (out_features, in_features)
    bound_fc = 1.0 / jnp.sqrt(jnp.float32(C))
    w_fc = jax.random.uniform(k_fc_w, (HIDDEN, C), minval=-bound_fc,
                              maxval=bound_fc, dtype=jnp.float32)
    b_fc = jax.random.uniform(k_fc_b, (HIDDEN,), minval=-bound_fc,
                              maxval=bound_fc, dtype=jnp.float32)
    bound_h = 1.0 / jnp.sqrt(jnp.float32(HIDDEN))
    w_q = jax.random.uniform(k_q, (4, HIDDEN), minval=-bound_h,
                             maxval=bound_h, dtype=jnp.float32)
    w_t = jax.random.uniform(k_t, (3, HIDDEN), minval=-bound_h,
                             maxval=bound_h, dtype=jnp.float32)

    params = prepare_regressor_params(w_fc, b_fc, w_q, w_t)
    h, q, t = regressor_forward(x, *params)
    jax.block_until_ready((h, q, t))

    # Reference in plain JAX (q/t use the precomposed head in f32, so they may
    # differ from a cast-then-matmul reference only at fp rounding level).
    pooled_ref = jnp.mean(x, axis=(2, 3))
    h_ref = pooled_ref @ w_fc.T + b_fc
    q_ref = h_ref @ w_q.T
    t_ref = h_ref @ w_t.T

    assert h.shape == (B, HIDDEN) and q.shape == (B, 4) and t.shape == (B, 3)
    assert jnp.allclose(h, h_ref, atol=2e-3, rtol=2e-3)
    assert jnp.allclose(q, q_ref, atol=2e-3, rtol=2e-3)
    assert jnp.allclose(t, t_ref, atol=2e-3, rtol=2e-3)

    print("KERNEL_OK")
</pallas_src>

<mosaic_0001>
module attributes {stable_mosaic.version = 11 : i64} {
  func.func @_regressor_kernel(%arg0: i32, %arg1: i32, %arg2: memref<2x4x256xf32, #tpu.memory_space<vmem>>, %arg3: memref<4x1024xf32, #tpu.memory_space<vmem>>, %arg4: memref<1x1024xf32, #tpu.memory_space<vmem>>, %arg5: memref<4x128xf32, #tpu.memory_space<vmem>>, %arg6: memref<1x128xf32, #tpu.memory_space<vmem>>, %arg7: memref<2x1024xf32, #tpu.memory_space<vmem>>, %arg8: memref<2x128xf32, #tpu.memory_space<vmem>>, %arg9: memref<2x4xf32, #tpu.memory_space<vmem>>) attributes {dimension_semantics = [#tpu.dimension_semantics<parallel>, #tpu.dimension_semantics<arbitrary>], iteration_bounds = array<i64: 1, 1>, scalar_prefetch = 0 : i64, scratch_operands = 1 : i64, tpu.core_type = #tpu.core_type<tc>, window_params = [{transform_indices = @transform_0, window_bounds = array<i64: 2, 4, 256>}, {pipeline_mode = #tpu.pipeline_mode<synchronous>, transform_indices = @transform_1, window_bounds = array<i64: 4, 1024>}, {pipeline_mode = #tpu.pipeline_mode<synchronous>, transform_indices = @transform_2, window_bounds = array<i64: 1, 1024>}, {pipeline_mode = #tpu.pipeline_mode<synchronous>, transform_indices = @transform_3, window_bounds = array<i64: 4, 128>}, {pipeline_mode = #tpu.pipeline_mode<synchronous>, transform_indices = @transform_4, window_bounds = array<i64: 1, 128>}, {transform_indices = @transform_5, window_bounds = array<i64: 2, 1024>}, {transform_indices = @transform_6, window_bounds = array<i64: 2, 128>}]} {
    %c0_i32 = arith.constant 0 : i32
    %0 = arith.cmpi eq, %arg1, %c0_i32 : i32
    %1 = arith.extui %0 : i1 to i32
    %c0_i32_0 = arith.constant 0 : i32
    %2 = arith.cmpi ne, %1, %c0_i32_0 : i32
    scf.if %2 {
      %cst_9 = arith.constant 0.000000e+00 : f32
      %11 = vector.broadcast %cst_9 : f32 to vector<2x4xf32>
      %c0_10 = arith.constant 0 : index
      %c0_11 = arith.constant 0 : index
      %12 = vector.load %arg9[%c0_10, %c0_11] : memref<2x4xf32, #tpu.memory_space<vmem>>, vector<2x4xf32>
      tpu.vector_store %arg9[%c0_10, %c0_11], %11 {strides = array<i32>} : memref<2x4xf32, #tpu.memory_space<vmem>>, vector<2x4xf32>,
    } else {
    }
    %c0 = arith.constant 0 : index
    %c0_1 = arith.constant 0 : index
    %3 = vector.load %arg9[%c0, %c0_1] : memref<2x4xf32, #tpu.memory_space<vmem>>, vector<2x4xf32>
    %c0_2 = arith.constant 0 : index
    %c0_3 = arith.constant 0 : index
    %c0_4 = arith.constant 0 : index
    %4 = vector.load %arg2[%c0_2, %c0_3, %c0_4] : memref<2x4x256xf32, #tpu.memory_space<vmem>>, vector<2x4x256xf32>
    %cst = arith.constant dense<0.000000e+00> : vector<2x4xf32>
    %5 = vector.multi_reduction <add>, %4, %cst [2] : vector<2x4x256xf32> to vector<2x4xf32>
    %6 = arith.addf %3, %5 : vector<2x4xf32>
    %c0_5 = arith.constant 0 : index
    %c0_6 = arith.constant 0 : index
    %7 = vector.load %arg9[%c0_5, %c0_6] : memref<2x4xf32, #tpu.memory_space<vmem>>, vector<2x4xf32>
    tpu.vector_store %arg9[%c0_5, %c0_6], %6 {strides = array<i32>} : memref<2x4xf32, #tpu.memory_space<vmem>>, vector<2x4xf32>,
    %c0_i32_7 = arith.constant 0 : i32
    %8 = arith.cmpi eq, %arg1, %c0_i32_7 : i32
    %9 = arith.extui %8 : i1 to i32
    %c0_i32_8 = arith.constant 0 : i32
    %10 = arith.cmpi ne, %9, %c0_i32_8 : i32
    scf.if %10 {
      %c0_9 = arith.constant 0 : index
      %c0_10 = arith.constant 0 : index
      %11 = vector.load %arg9[%c0_9, %c0_10] : memref<2x4xf32, #tpu.memory_space<vmem>>, vector<2x4xf32>
      %cst_11 = arith.constant 3.906250e-03 : f32
      %12 = vector.broadcast %cst_11 : f32 to vector<2x4xf32>
      %13 = arith.mulf %11, %12 : vector<2x4xf32>
      %c0_12 = arith.constant 0 : index
      %c0_13 = arith.constant 0 : index
      %14 = vector.load %arg3[%c0_12, %c0_13] : memref<4x1024xf32, #tpu.memory_space<vmem>>, vector<4x1024xf32>
      %cst_14 = arith.constant dense<0.000000e+00> : vector<2x1024xf32>
      %15 = tpu.matmul %13, %14, %cst_14 {dimension_numbers = #tpu.dot_dimension_numbers<[1], [0], [0], [1], [0, 0, 1, 1], [], []>} : vector<2x4xf32>, vector<4x1024xf32>, vector<2x1024xf32> -> vector<2x1024xf32>
      %c0_15 = arith.constant 0 : index
      %c0_16 = arith.constant 0 : index
      %16 = vector.load %arg4[%c0_15, %c0_16] : memref<1x1024xf32, #tpu.memory_space<vmem>>, vector<1x1024xf32>
      %17 = vector.broadcast %16 : vector<1x1024xf32> to vector<2x1024xf32>
      %18 = arith.addf %15, %17 : vector<2x1024xf32>
      %c0_17 = arith.constant 0 : index
      %c0_18 = arith.constant 0 : index
      %19 = vector.load %arg7[%c0_17, %c0_18] : memref<2x1024xf32, #tpu.memory_space<vmem>>, vector<2x1024xf32>
      tpu.vector_store %arg7[%c0_17, %c0_18], %18 {strides = array<i32>} : memref<2x1024xf32, #tpu.memory_space<vmem>>, vector<2x1024xf32>,
      %c0_19 = arith.constant 0 : index
      %c0_20 = arith.constant 0 : index
      %20 = vector.load %arg5[%c0_19, %c0_20] : memref<4x128xf32, #tpu.memory_space<vmem>>, vector<4x128xf32>
      %cst_21 = arith.constant dense<0.000000e+00> : vector<2x128xf32>
      %21 = tpu.matmul %13, %20, %cst_21 {dimension_numbers = #tpu.dot_dimension_numbers<[1], [0], [0], [1], [0, 0, 1, 1], [], []>} : vector<2x4xf32>, vector<4x128xf32>, vector<2x128xf32> -> vector<2x128xf32>
      %c0_22 = arith.constant 0 : index
      %c0_23 = arith.constant 0 : index
      %22 = vector.load %arg6[%c0_22, %c0_23] : memref<1x128xf32, #tpu.memory_space<vmem>>, vector<1x128xf32>
      %23 = vector.broadcast %22 : vector<1x128xf32> to vector<2x128xf32>
      %24 = arith.addf %21, %23 : vector<2x128xf32>
      %c0_24 = arith.constant 0 : index
      %c0_25 = arith.constant 0 : index
      %25 = vector.load %arg8[%c0_24, %c0_25] : memref<2x128xf32, #tpu.memory_space<vmem>>, vector<2x128xf32>
      tpu.vector_store %arg8[%c0_24, %c0_25], %24 {strides = array<i32>} : memref<2x128xf32, #tpu.memory_space<vmem>>, vector<2x128xf32>,
    } else {
    }
    return
  }
  func.func @transform_0(%arg0: i32, %arg1: i32) -> (i32, i32, i32) {
    %c0_i32 = arith.constant 0 : i32
    %c0_i32_0 = arith.constant 0 : i32
    return %arg0, %c0_i32, %arg1 : i32, i32, i32
  }
  func.func @transform_1(%arg0: i32, %arg1: i32) -> (i32, i32) {
    %c0_i32 = arith.constant 0 : i32
    %c0_i32_0 = arith.constant 0 : i32
    %c0_i32_1 = arith.constant 0 : i32
    return %c0_i32, %c0_i32_0 : i32, i32
  }
  func.func @transform_2(%arg0: i32, %arg1: i32) -> (i32, i32) {
    %c0_i32 = arith.constant 0 : i32
    %c0_i32_0 = arith.constant 0 : i32
    %c0_i32_1 = arith.constant 0 : i32
    return %c0_i32, %c0_i32_0 : i32, i32
  }
  func.func @transform_3(%arg0: i32, %arg1: i32) -> (i32, i32) {
    %c0_i32 = arith.constant 0 : i32
    %c0_i32_0 = arith.constant 0 : i32
    %c0_i32_1 = arith.constant 0 : i32
    return %c0_i32, %c0_i32_0 : i32, i32
  }
  func.func @transform_4(%arg0: i32, %arg1: i32) -> (i32, i32) {
    %c0_i32 = arith.constant 0 : i32
    %c0_i32_0 = arith.constant 0 : i32
    %c0_i32_1 = arith.constant 0 : i32
    return %c0_i32, %c0_i32_0 : i32, i32
  }
  func.func @transform_5(%arg0: i32, %arg1: i32) -> (i32, i32) {
    %c0_i32 = arith.constant 0 : i32
    %c0_i32_0 = arith.constant 0 : i32
    return %arg0, %c0_i32 : i32, i32
  }
  func.func @transform_6(%arg0: i32, %arg1: i32) -> (i32, i32) {
    %c0_i32 = arith.constant 0 : i32
    %c0_i32_0 = arith.constant 0 : i32
    return %arg0, %c0_i32 : i32, i32
  }
}

</mosaic_0001>

<llo_original>
// kernel: tpu_custom_call.1
$region0: #{tpu_custom_call.1}
  #allocation0 [shape = 'u32[]', space=smem, size = 0x4, offset = 0x4, fixed_abs, tag = 'smem constant byte address 0x4 - core index']
  #allocation1 [shape = 'u32[72,128]{1,0:T(1,128)}', space=vmem, size = 0x9000, scoped, tag = 'internal scratch']
  #allocation2 [shape = 'f32[2,4]{1,0:T(2,128)}', space=vmem, size = 0x400, scoped, tag = 'scratch operand']
  %s0 = inlined_call_operand.hbm [shape: f32[2,4,256], index: 0, kind: input, shape index: {}]
  %s1 = inlined_call_operand.hbm [shape: f32[4,1024], index: 1, kind: input, shape index: {}]
  %s2 = inlined_call_operand.hbm [shape: f32[1,1024], index: 2, kind: input, shape index: {}]
  %s3 = inlined_call_operand.hbm [shape: f32[4,128], index: 3, kind: input, shape index: {}]
  %s4 = inlined_call_operand.vmem [shape: f32[1,128], index: 4, kind: input, shape index: {}]
  %s5 = inlined_call_operand.hbm [shape: f32[2,1024], index: 5, kind: output, shape index: {0}]
  %s6 = inlined_call_operand.hbm [shape: f32[2,128], index: 6, kind: output, shape index: {1}]
  %7 = xla_tuple %s5, %s6
  %s8 = sld [smem:[#allocation0]]
  $region62: #{tpu_custom_call.1} parent=0
    _
  %s10 = ssub.s32 1, %s8
  %s11 = scalar_select 0, %s10, %s8
  $region1: #{tpu_custom_call.1} parent=0
    #allocation3 [shape = 'u8[8192]{0}', space=vmem, size = 0x2000, scoped, tag = 'input window, operand 0, single buffered']
    #allocation4 [shape = 's32[1]{0}', space=sflag, size = 0x4, scoped, tag = 'scoped memory for tpu_custom_call.1']
    #allocation5 [shape = 's32[1]{0}', space=sflag, size = 0x4, scoped, tag = 'scoped memory for tpu_custom_call.1']
    #allocation6 [shape = 'u8[16384]{0}', space=vmem, size = 0x4000, scoped, tag = 'input window, operand 1, single buffered']
    #allocation7 [shape = 's32[1]{0}', space=sflag, size = 0x4, scoped, tag = 'scoped memory for tpu_custom_call.1']
    #allocation8 [shape = 'u8[4096]{0}', space=vmem, size = 0x1000, scoped, tag = 'input window, operand 2, single buffered']
    #allocation9 [shape = 'u8[2048]{0}', space=vmem, size = 0x800, scoped, tag = 'input window, operand 3, single buffered']
    #allocation10 [shape = 's32[1]{0}', space=sflag, size = 0x4, scoped, tag = 'scoped memory for tpu_custom_call.1']
    #allocation11 [shape = 'u8[8192]{0}', space=vmem, size = 0x2000, scoped, tag = 'output window, operand 0, single buffered']
    #allocation12 [shape = 'u8[1024]{0}', space=vmem, size = 0x400, scoped, tag = 'output window, operand 1, single buffered']
    #allocation13 [shape = 's32[1]{0}', space=sflag, size = 0x4, scoped, tag = 'scoped memory for tpu_custom_call.1']
    %12 = vsyncpa [#allocation4], 0
    %13 = vsyncpa [#allocation7], 0
    %14 = vsyncpa [#allocation10], 0
    %15 = vsyncpa [#allocation5], 0
    %16 = vsyncpa [#allocation13], 0
    // Predicated region
    $region2: #{tpu_custom_call.1} parent=1 // pred_check
      _
    $region3: #{tpu_custom_call.1} parent=1 // pred_check_branch
      %18 = sbr.rel (0) target = $region5
    $region4: #{tpu_custom_call.1} parent=1 // pred_region
      %20 = vsyncadd [#allocation4], 0
      %s21 = sshll.u32 %s0, 4
      %s22 = int_to_ptr.hbm [resolvable:$true] %s21
      %s23 = sshll.u32 [#allocation3], 4
      %s24 = int_to_ptr.vmem [resolvable:$true] %s23
      %29 = dma.hbm_to_vmem [thread:$0]  %s22, 256, %s24, [#allocation4], 128, 128, 8
    $region5: #{tpu_custom_call.1} parent=1 // pred_fallthru
      _
    // Predicated region
    $region6: #{tpu_custom_call.1} parent=1 // pred_check
      _
    $region7: #{tpu_custom_call.1} parent=1 // pred_check_branch
      %31 = sbr.rel (0) target = $region9
    $region8: #{tpu_custom_call.1} parent=1 // pred_region
      %33 = vsyncadd [#allocation7], 0
      %s35 = sshll.u32 %s1, 4
      %s36 = int_to_ptr.hbm [resolvable:$true] %s35
      %s37 = sshll.u32 [#allocation6], 4
      %s38 = int_to_ptr.vmem [resolvable:$true] %s37
      %40 = dma.hbm_to_vmem [thread:$0]  %s36, 512, %s38, [#allocation7]
    $region9: #{tpu_custom_call.1} parent=1 // pred_fallthru
      _
    // Predicated region
    $region10: #{tpu_custom_call.1} parent=1 // pred_check
      _
    $region11: #{tpu_custom_call.1} parent=1 // pred_check_branch
      %42 = sbr.rel (0) target = $region13
    $region12: #{tpu_custom_call.1} parent=1 // pred_region
      %44 = vsyncadd [#allocation7], 0
      %s46 = sshll.u32 %s2, 4
      %s47 = int_to_ptr.hbm [resolvable:$true] %s46
      %s48 = sshll.u32 [#allocation8], 4
      %s49 = int_to_ptr.vmem [resolvable:$true] %s48
      %51 = dma.hbm_to_vmem [thread:$0]  %s47, 128, %s49, [#allocation7]
    $region13: #{tpu_custom_call.1} parent=1 // pred_fallthru
      _
    // Predicated region
    $region14: #{tpu_custom_call.1} parent=1 // pred_check
      _
    $region15: #{tpu_custom_call.1} parent=1 // pred_check_branch
      %53 = sbr.rel (0) target = $region17
    $region16: #{tpu_custom_call.1} parent=1 // pred_region
      %55 = vsyncadd [#allocation10], 0
      %s57 = sshll.u32 %s3, 4
      %s58 = int_to_ptr.hbm [resolvable:$true] %s57
      %s59 = sshll.u32 [#allocation9], 4
      %s60 = int_to_ptr.vmem [resolvable:$true] %s59
      %62 = dma.hbm_to_vmem [thread:$0]  %s58, 64, %s60, [#allocation10]
    $region17: #{tpu_custom_call.1} parent=1 // pred_fallthru
      _
    // Predicated region
    $region18: #{tpu_custom_call.1} parent=1 // pred_check
      _
    $region19: #{tpu_custom_call.1} parent=1 // pred_check_branch
      %64 = sbr.rel (0) target = $region21
    $region20: #{tpu_custom_call.1} parent=1 // pred_region
      _
    $region21: #{tpu_custom_call.1} parent=1 // pred_fallthru
      _
    // Predicated region
    $region22: #{tpu_custom_call.1} parent=1 // pred_check
      _
    $region23: #{tpu_custom_call.1} parent=1 // pred_check_branch
      %66 = sbr.rel (0) target = $region25
    $region24: #{tpu_custom_call.1} parent=1 // pred_region
      %68 = dma.done [#allocation4], 256
    $region25: #{tpu_custom_call.1} parent=1 // pred_fallthru
      _
    // Predicated region
    $region26: #{tpu_custom_call.1} parent=1 // pred_check
      _
    $region27: #{tpu_custom_call.1} parent=1 // pred_check_branch
      %70 = sbr.rel (0) target = $region29
    $region28: #{tpu_custom_call.1} parent=1 // pred_region
      %72 = dma.done [#allocation7], 512
    $region29: #{tpu_custom_call.1} parent=1 // pred_fallthru
      _
    // Predicated region
    $region30: #{tpu_custom_call.1} parent=1 // pred_check
      _
    $region31: #{tpu_custom_call.1} parent=1 // pred_check_branch
      %74 = sbr.rel (0) target = $region33
    $region32: #{tpu_custom_call.1} parent=1 // pred_region
      %76 = dma.done [#allocation7], 128
    $region33: #{tpu_custom_call.1} parent=1 // pred_fallthru
      _
    // Predicated region
    $region34: #{tpu_custom_call.1} parent=1 // pred_check
      _
    $region35: #{tpu_custom_call.1} parent=1 // pred_check_branch
      %78 = sbr.rel (0) target = $region37
    $region36: #{tpu_custom_call.1} parent=1 // pred_region
      %80 = dma.done [#allocation10], 64
    $region37: #{tpu_custom_call.1} parent=1 // pred_fallthru
      _
    %p81 = scmp.eq.s32.totalorder 0, 0
    // Predicated region
    $region38: #{tpu_custom_call.1} parent=1 // pred_check
      %p82 = pneg %p81
    $region39: #{tpu_custom_call.1} parent=1 // pred_check_branch
      %84 = sbr.rel (%p82) target = $region41
    $region40: #{tpu_custom_call.1} parent=1 // pred_region
      %vm85 = vcmask 25600
      %86 = vst.msk [vmem:[#allocation2] sm:$0x3] %vm85, 0.0
    $region41: #{tpu_custom_call.1} parent=1 // pred_fallthru
      _
    %v87 = vld [vmem:[#allocation2] sm:$0x3]
    %v88 = vld [vmem:[#allocation3] sm:$0xff]
    %v89 = vld [vmem:[#allocation3 + $0x8] sm:$0xff]
    %92 = vst [vmem:[#allocation1] ss:$2 sm:$0xff] %v88
    %v93 = vld.sshfl [vmem:[#allocation1] sm:$0xff pattern:$0x75316420]
    %v94 = vld.sshfl [vmem:[#allocation1 + $0x8] sm:$0xff pattern:$0x75316420]
    %s95 = scalar_lea.vmem [#allocation1], 16
    %96 = vst [vmem:[%s95] ss:$2 sm:$0xff] %v89
    %v97 = vld.sshfl [vmem:[#allocation1 + $0x10] sm:$0xff pattern:$0x75316420]
    %v98 = vld.sshfl [vmem:[#allocation1 + $0x18] sm:$0xff pattern:$0x75316420]
    %vm103 = vcmask 1043456
    %v104 = vsel %vm103, %v93, 0.0
    %v105 = vsel %vm103, %v94, 0.0
    %v106 = vadd.f32 %v104, %v105
    %107 = vadd.xlane.f32.xlu0 %v106
    %v108 = vpop.xlane.xlu0 %107
    %v109 = vsel %vm103, %v97, 0.0
    %v110 = vsel %vm103, %v98, 0.0
    %v111 = vadd.f32 %v109, %v110
    %112 = vadd.xlane.f32.xlu0 %v111
    %v113 = vpop.xlane.xlu0 %112
    %v116 = vlaneseq
    %v117 = vand.u32 %v116, 127
    %v118 = vperm.slane %v108, %v117
    %v119 = vperm.slane %v113, %v117
    %vm120 = vcmask 1041409
    %v121 = vsel %vm120, %v119, %v118
    %v123 = vadd.f32 %v87, %v121
    %vm124 = vcmask 25600
    %125 = vst.msk [vmem:[#allocation2] sm:$0x3] %vm124, %v123
    // Predicated region
    $region42: #{tpu_custom_call.1} parent=1 // pred_check
      %p126 = pneg %p81
    $region43: #{tpu_custom_call.1} parent=1 // pred_check_branch
      %128 = sbr.rel (%p126) target = $region45
    $region44: #{tpu_custom_call.1} parent=1 // pred_region
      %v129 = vld [vmem:[#allocation2] sm:$0x3]
      %v130 = vmul.f32 %v129, 0.00390625
      %v131 = vld [vmem:[#allocation6] sm:$0xff]
      %v132 = vld [vmem:[#allocation6 + $0x8] sm:$0xff]
      %v133 = vld [vmem:[#allocation6 + $0x10] sm:$0xff]
      %v134 = vld [vmem:[#allocation6 + $0x18] sm:$0xff]
      %v135 = vld [vmem:[#allocation8] sm:$0xff]
      %v137 = vperm.slane %v135, 0
      %v138 = vperm.slane %v135, 1
      %v139 = vperm.slane %v135, 2
      %v140 = vperm.slane %v135, 3
      %v141 = vperm.slane %v135, 4
      %v142 = vperm.slane %v135, 5
      %v143 = vperm.slane %v135, 6
      %v144 = vperm.slane %v135, 7
      %157 = vst [vmem:[#allocation1] ss:$2 sm:$0xff] %v131
      %s158 = scalar_lea.vmem [#allocation1], 16
      %159 = vst [vmem:[%s158] ss:$2 sm:$0xff] %v132
      %s160 = scalar_lea.vmem [#allocation1], 32
      %161 = vst [vmem:[%s160] ss:$2 sm:$0xff] %v133
      %s162 = scalar_lea.vmem [#allocation1], 48
      %163 = vst [vmem:[%s162] ss:$2 sm:$0xff] %v134
      %v164 = vld.sshfl [vmem:[#allocation1] sm:$0xff pattern:$0x75316420]
      %v165 = vld.sshfl [vmem:[#allocation1 + $0x8] sm:$0xff pattern:$0x75316420]
      %v166 = vld.sshfl [vmem:[#allocation1 + $0x10] sm:$0xff pattern:$0x75316420]
      %v167 = vld.sshfl [vmem:[#allocation1 + $0x18] sm:$0xff pattern:$0x75316420]
      %v168 = vld.sshfl [vmem:[#allocation1 + $0x20] sm:$0xff pattern:$0x75316420]
      %v169 = vld.sshfl [vmem:[#allocation1 + $0x28] sm:$0xff pattern:$0x75316420]
      %v170 = vld.sshfl [vmem:[#allocation1 + $0x30] sm:$0xff pattern:$0x75316420]
      %v171 = vld.sshfl [vmem:[#allocation1 + $0x38] sm:$0xff pattern:$0x75316420]
      %vm172 = vcmask 31744
      %v174 = vsel %vm172, %v130, 0
      %v176 = vsel %vm103, %v164, 0
      %v178 = vsel %vm103, %v165, 0
      %v180 = vsel %vm103, %v166, 0
      %v182 = vsel %vm103, %v167, 0
      %v184 = vsel %vm103, %v168, 0
      %v186 = vsel %vm103, %v169, 0
      %v188 = vsel %vm103, %v170, 0
      %v190 = vsel %vm103, %v171, 0
      %192 = vmatpush.msra.mxu0 0.0
      %193 = vmatpush.msra.mxu0 0.0
      %194 = vmatpush.msra.mxu0 0.0
      %195 = vmatpush.msra.mxu0 0.0
      %196 = vmatpush.msra.mxu0 0.0
      %197 = vmatpush.msra.mxu0 0.0
      %198 = vmatpush.msra.mxu0 0.0
      %199 = vmatpush.msra.mxu0 0.0
      %200 = vmatpush.msra.mxu0 0.0
      %201 = vmatpush.msra.mxu0 0.0
      %202 = vmatpush.msra.mxu0 0.0
      %203 = vmatpush.msra.mxu0 0.0
      %204 = vmatpush.msra.mxu0 0.0
      %205 = vmatpush.msra.mxu0 0.0
      %206 = vmatpush.msra.mxu0 0.0
      %207 = vmatpush.msra.mxu0 %v176
      %208 = vmatmul.f32.gmra.mxu0 %v174
      %v209 = vpop.f32.mrf.mxu0
      %v210 = vadd.f32 %v137, %v209
      %211 = vdwg.mxu0
      %212 = vmatpush.msra.mxu0 0.0
      %213 = vmatpush.msra.mxu0 0.0
      %214 = vmatpush.msra.mxu0 0.0
      %215 = vmatpush.msra.mxu0 0.0
      %216 = vmatpush.msra.mxu0 0.0
      %217 = vmatpush.msra.mxu0 0.0
      %218 = vmatpush.msra.mxu0 0.0
      %219 = vmatpush.msra.mxu0 0.0
      %220 = vmatpush.msra.mxu0 0.0
      %221 = vmatpush.msra.mxu0 0.0
      %222 = vmatpush.msra.mxu0 0.0
      %223 = vmatpush.msra.mxu0 0.0
      %224 = vmatpush.msra.mxu0 0.0
      %225 = vmatpush.msra.mxu0 0.0
      %226 = vmatpush.msra.mxu0 0.0
      %227 = vmatpush.msra.mxu0 %v178
      %228 = vmatmul.f32.gmra.mxu0 %v174
      %v229 = vpop.f32.mrf.mxu0
      %v230 = vadd.f32 %v138, %v229
      %231 = vdwg.mxu0
      %232 = vmatpush.msra.mxu0 0.0
      %233 = vmatpush.msra.mxu0 0.0
      %234 = vmatpush.msra.mxu0 0.0
      %235 = vmatpush.msra.mxu0 0.0
      %236 = vmatpush.msra.mxu0 0.0
      %237 = vmatpush.msra.mxu0 0.0
      %238 = vmatpush.msra.mxu0 0.0
      %239 = vmatpush.msra.mxu0 0.0
      %240 = vmatpush.msra.mxu0 0.0
      %241 = vmatpush.msra.mxu0 0.0
      %242 = vmatpush.msra.mxu0 0.0
      %243 = vmatpush.msra.mxu0 0.0
      %244 = vmatpush.msra.mxu0 0.0
      %245 = vmatpush.msra.mxu0 0.0
      %246 = vmatpush.msra.mxu0 0.0
      %247 = vmatpush.msra.mxu0 %v180
      %248 = vmatmul.f32.gmra.mxu0 %v174
      %v249 = vpop.f32.mrf.mxu0
      %v250 = vadd.f32 %v139, %v249
      %251 = vdwg.mxu0
      %252 = vmatpush.msra.mxu0 0.0
      %253 = vmatpush.msra.mxu0 0.0
      %254 = vmatpush.msra.mxu0 0.0
      %255 = vmatpush.msra.mxu0 0.0
      %256 = vmatpush.msra.mxu0 0.0
      %257 = vmatpush.msra.mxu0 0.0
      %258 = vmatpush.msra.mxu0 0.0
      %259 = vmatpush.msra.mxu0 0.0
      %260 = vmatpush.msra.mxu0 0.0
      %261 = vmatpush.msra.mxu0 0.0
      %262 = vmatpush.msra.mxu0 0.0
      %263 = vmatpush.msra.mxu0 0.0
      %264 = vmatpush.msra.mxu0 0.0
      %265 = vmatpush.msra.mxu0 0.0
      %266 = vmatpush.msra.mxu0 0.0
      %267 = vmatpush.msra.mxu0 %v182
      %268 = vmatmul.f32.gmra.mxu0 %v174
      %v269 = vpop.f32.mrf.mxu0
      %v270 = vadd.f32 %v140, %v269
      %271 = vdwg.mxu0
      %272 = vmatpush.msra.mxu0 0.0
      %273 = vmatpush.msra.mxu0 0.0
      %274 = vmatpush.msra.mxu0 0.0
      %275 = vmatpush.msra.mxu0 0.0
      %276 = vmatpush.msra.mxu0 0.0
      %277 = vmatpush.msra.mxu0 0.0
      %278 = vmatpush.msra.mxu0 0.0
      %279 = vmatpush.msra.mxu0 0.0
      %280 = vmatpush.msra.mxu0 0.0
      %281 = vmatpush.msra.mxu0 0.0
      %282 = vmatpush.msra.mxu0 0.0
      %283 = vmatpush.msra.mxu0 0.0
      %284 = vmatpush.msra.mxu0 0.0
      %285 = vmatpush.msra.mxu0 0.0
      %286 = vmatpush.msra.mxu0 0.0
      %287 = vmatpush.msra.mxu0 %v184
      %288 = vmatmul.f32.gmra.mxu0 %v174
      %v289 = vpop.f32.mrf.mxu0
      %v290 = vadd.f32 %v141, %v289
      %291 = vdwg.mxu0
      %292 = vmatpush.msra.mxu0 0.0
      %293 = vmatpush.msra.mxu0 0.0
      %294 = vmatpush.msra.mxu0 0.0
      %295 = vmatpush.msra.mxu0 0.0
      %296 = vmatpush.msra.mxu0 0.0
      %297 = vmatpush.msra.mxu0 0.0
      %298 = vmatpush.msra.mxu0 0.0
      %299 = vmatpush.msra.mxu0 0.0
      %300 = vmatpush.msra.mxu0 0.0
      %301 = vmatpush.msra.mxu0 0.0
      %302 = vmatpush.msra.mxu0 0.0
      %303 = vmatpush.msra.mxu0 0.0
      %304 = vmatpush.msra.mxu0 0.0
      %305 = vmatpush.msra.mxu0 0.0
      %306 = vmatpush.msra.mxu0 0.0
      %307 = vmatpush.msra.mxu0 %v186
      %308 = vmatmul.f32.gmra.mxu0 %v174
      %v309 = vpop.f32.mrf.mxu0
      %v310 = vadd.f32 %v142, %v309
      %311 = vdwg.mxu0
      %312 = vmatpush.msra.mxu0 0.0
      %313 = vmatpush.msra.mxu0 0.0
      %314 = vmatpush.msra.mxu0 0.0
      %315 = vmatpush.msra.mxu0 0.0
      %316 = vmatpush.msra.mxu0 0.0
      %317 = vmatpush.msra.mxu0 0.0
      %318 = vmatpush.msra.mxu0 0.0
      %319 = vmatpush.msra.mxu0 0.0
      %320 = vmatpush.msra.mxu0 0.0
      %321 = vmatpush.msra.mxu0 0.0
      %322 = vmatpush.msra.mxu0 0.0
      %323 = vmatpush.msra.mxu0 0.0
      %324 = vmatpush.msra.mxu0 0.0
      %325 = vmatpush.msra.mxu0 0.0
      %326 = vmatpush.msra.mxu0 0.0
      %327 = vmatpush.msra.mxu0 %v188
      %328 = vmatmul.f32.gmra.mxu0 %v174
      %v329 = vpop.f32.mrf.mxu0
      %v330 = vadd.f32 %v143, %v329
      %331 = vdwg.mxu0
      %332 = vmatpush.msra.mxu0 0.0
      %333 = vmatpush.msra.mxu0 0.0
      %334 = vmatpush.msra.mxu0 0.0
      %335 = vmatpush.msra.mxu0 0.0
      %336 = vmatpush.msra.mxu0 0.0
      %337 = vmatpush.msra.mxu0 0.0
      %338 = vmatpush.msra.mxu0 0.0
      %339 = vmatpush.msra.mxu0 0.0
      %340 = vmatpush.msra.mxu0 0.0
      %341 = vmatpush.msra.mxu0 0.0
      %342 = vmatpush.msra.mxu0 0.0
      %343 = vmatpush.msra.mxu0 0.0
      %344 = vmatpush.msra.mxu0 0.0
      %345 = vmatpush.msra.mxu0 0.0
      %346 = vmatpush.msra.mxu0 0.0
      %347 = vmatpush.msra.mxu0 %v190
      %348 = vmatmul.f32.gmra.mxu0 %v174
      %v349 = vpop.f32.mrf.mxu0
      %v350 = vadd.f32 %v144, %v349
      %351 = vdwg.mxu0
      %v360 = vrot.slane %v230, 6
      %v361 = vrot.slane %v250, 4
      %v362 = vrot.slane %v270, 2
      %v363 = vrot.slane %v310, 6
      %v364 = vrot.slane %v330, 4
      %v365 = vrot.slane %v350, 2
      %vm366 = vcmask 1041408
      %v367 = vsel %vm366, %v210, %v360
      %vm368 = vcmask 1045508
      %v369 = vsel %vm368, %v361, %v362
      %v370 = vsel %vm103, %v367, %v369
      %v371 = vsel %vm366, %v290, %v363
      %v372 = vsel %vm368, %v364, %v365
      %v373 = vsel %vm103, %v371, %v372
      %376 = vst [vmem:[#allocation11] sm:$0xff] %v370
      %377 = vst [vmem:[#allocation11 + $0x8] sm:$0xff] %v373
      %v378 = vld [vmem:[#allocation9] sm:$0xf]
      %v379 = vld [vmem:[%s4] sm:$0x1]
      %v381 = vperm.slane %v379, 0
      %v384 = vsel %vm103, %v378, 0
      %386 = vmatpush.msra.mxu0 0.0
      %387 = vmatpush.msra.mxu0 0.0
      %388 = vmatpush.msra.mxu0 0.0
      %389 = vmatpush.msra.mxu0 0.0
      %390 = vmatpush.msra.mxu0 0.0
      %391 = vmatpush.msra.mxu0 0.0
      %392 = vmatpush.msra.mxu0 0.0
      %393 = vmatpush.msra.mxu0 0.0
      %394 = vmatpush.msra.mxu0 0.0
      %395 = vmatpush.msra.mxu0 0.0
      %396 = vmatpush.msra.mxu0 0.0
      %397 = vmatpush.msra.mxu0 0.0
      %398 = vmatpush.msra.mxu0 0.0
      %399 = vmatpush.msra.mxu0 0.0
      %400 = vmatpush.msra.mxu0 0.0
      %401 = vmatpush.msra.mxu0 %v384
      %402 = vmatmul.f32.gmra.mxu0 %v174
      %v403 = vpop.f32.mrf.mxu0
      %v404 = vadd.f32 %v381, %v403
      %405 = vdwg.mxu0
      %406 = vst [vmem:[#allocation12] sm:$0x3] %v404
    $region45: #{tpu_custom_call.1} parent=1 // pred_fallthru
      _
    // Predicated region
    $region46: #{tpu_custom_call.1} parent=1 // pred_check
      _
    $region47: #{tpu_custom_call.1} parent=1 // pred_check_branch
      %408 = sbr.rel (0) target = $region49
    $region48: #{tpu_custom_call.1} parent=1 // pred_region
      %410 = vsyncadd [#allocation5], 0
      %s412 = sshll.u32 [#allocation11], 4
      %s413 = int_to_ptr.vmem [resolvable:$true] %s412
      %s414 = sshll.u32 %s5, 4
      %s415 = int_to_ptr.hbm [resolvable:$true] %s414
      %417 = dma.vmem_to_hbm [thread:$0]  %s413, 256, %s415, [#allocation5]
    $region49: #{tpu_custom_call.1} parent=1 // pred_fallthru
      _
    // Predicated region
    $region50: #{tpu_custom_call.1} parent=1 // pred_check
      _
    $region51: #{tpu_custom_call.1} parent=1 // pred_check_branch
      %419 = sbr.rel (0) target = $region53
    $region52: #{tpu_custom_call.1} parent=1 // pred_region
      %421 = vsyncadd [#allocation13], 0
      %s423 = sshll.u32 [#allocation12], 4
      %s424 = int_to_ptr.vmem [resolvable:$true] %s423
      %s425 = sshll.u32 %s6, 4
      %s426 = int_to_ptr.hbm [resolvable:$true] %s425
      %428 = dma.vmem_to_hbm [thread:$0]  %s424, 32, %s426, [#allocation13]
    $region53: #{tpu_custom_call.1} parent=1 // pred_fallthru
      _
    // Predicated region
    $region54: #{tpu_custom_call.1} parent=1 // pred_check
      _
    $region55: #{tpu_custom_call.1} parent=1 // pred_check_branch
      %430 = sbr.rel (0) target = $region57
    $region56: #{tpu_custom_call.1} parent=1 // pred_region
      %432 = dma.done [#allocation5], 256
    $region57: #{tpu_custom_call.1} parent=1 // pred_fallthru
      _
    // Predicated region
    $region58: #{tpu_custom_call.1} parent=1 // pred_check
      _
    $region59: #{tpu_custom_call.1} parent=1 // pred_check_branch
      %434 = sbr.rel (0) target = $region61
    $region60: #{tpu_custom_call.1} parent=1 // pred_region
      %436 = dma.done [#allocation13], 32
    $region61: #{tpu_custom_call.1} parent=1 // pred_fallthru
      _
    %437 = vsyncpa [#allocation4], 1
    %438 = vsyncpa [#allocation7], 1
    %439 = vsyncpa [#allocation10], 1
    %440 = vsyncpa [#allocation5], 1
    %441 = vsyncpa [#allocation13], 1

</llo_original>
